<compile_context>
chip_gen: v7x
topology: tpu7x:2x2x1
jax: 0.10.0
libtpu: 0.0.40
codegen_flags: <defaults>
</compile_context>

<pallas_src>
import functools

import jax
import jax.numpy as jnp
from jax.experimental import pallas as pl
from jax.experimental.pallas import tpu as pltpu

LANES = 128              # TPU lane width (last block dim)
MAX_TILE_ROWS = 4096     # (4096,128) f32 block = 2 MiB; 2 inputs x 2 bufs = 8 MiB
SMALL_INPUT_ELEMS = 32 * 1024  # below this, fused XLA reduce beats pallas_call cost


def _round_up(x: int, m: int) -> int:
    return ((x + m - 1) // m) * m


@functools.lru_cache(maxsize=1)
def _num_tensorcores() -> int:
    """TensorCores per chip: 2 on 2-TC chips (v7x-class), 1 on v5e/v6e.

    Defensive: falls back to 1 if the runtime doesn't expose the count (a
    1-way 'parallel' axis is always correct)."""
    try:
        info = pltpu.get_tpu_info()
        for attr in ("num_cores", "num_tensorcores", "tensor_cores_per_chip",
                     "cores_per_chip"):
            v = getattr(info, attr, None)
            if isinstance(v, int) and 1 <= v <= 8:
                return v
    except Exception:
        pass
    try:
        v = getattr(jax.devices()[0], "num_cores", None)
        if isinstance(v, int) and 1 <= v <= 8:
            return v
    except Exception:
        pass
    return 1


def _mse_kernel(p_ref, t_ref, o_ref, *, rows, tile_rows, tiles_per_core, needs_mask):
    c = pl.program_id(0)   # TensorCore shard ("parallel")
    i = pl.program_id(1)   # streaming reduction axis ("arbitrary")

    @pl.when(i == 0)
    def _():
        o_ref[...] = jnp.zeros_like(o_ref)

    d = p_ref[...].astype(jnp.float32) - t_ref[...].astype(jnp.float32)
    d2 = d * d

    def fold(x):
        # (tile_rows,128) -> (1,8,128): splits the sublane dim exactly on the
        # (8,128) vreg tile boundary, so the sum is pure vreg-wise VPU adds.
        return x.reshape(tile_rows // 8, 8, LANES).sum(axis=0)[None, :, :]

    if needs_mask:
        row0 = (c * tiles_per_core + i) * tile_rows
        is_tail = row0 + tile_rows > rows  # partially-valid tail or phantom tile

        @pl.when(jnp.logical_not(is_tail))
        def _():
            o_ref[...] += fold(d2)

        @pl.when(is_tail)
        def _():
            # Sublane-only iota; the lane broadcast happens inside the select.
            row_ids = row0 + jax.lax.broadcasted_iota(jnp.int32, (tile_rows, 1), 0)
            o_ref[...] += fold(jnp.where(row_ids < rows, d2, 0.0))
    else:
        o_ref[...] += fold(d2)


def mean_squared_error(preds: jax.Array, target: jax.Array,
                       *, use_pallas: bool | None = None) -> jax.Array:
    """TorchMetric(module='regression', type='MeanSquaredError') forward pass."""
    assert preds.shape == target.shape, "preds/target must have the same shape"
    n = preds.size
    if n == 0:
        # torchmetrics would hit 0/0 here; preserve NaN semantics.
        return jnp.float32(jnp.nan)

    if use_pallas is None:
        use_pallas = n >= SMALL_INPUT_ELEMS
    if not use_pallas:
        # Tiny-input fast path: pallas_call fixed cost dwarfs the work here.
        d = preds.astype(jnp.float32) - target.astype(jnp.float32)
        return jnp.mean(d * d)

    # Stream narrow dtypes natively (f32 math happens in-register); mismatched
    # or >32-bit dtypes are normalized to f32.
    if preds.dtype != target.dtype or jnp.dtype(preds.dtype).itemsize > 4:
        preds = preds.astype(jnp.float32)
        target = target.astype(jnp.float32)

    p_flat = preds.reshape(-1)
    t_flat = target.reshape(-1)
    pad = (-n) % LANES
    if pad:  # zero pads contribute (0-0)^2 = 0; we divide by the true n below
        p_flat = jnp.pad(p_flat, (0, pad))
        t_flat = jnp.pad(t_flat, (0, pad))
    rows = p_flat.size // LANES
    p2 = p_flat.reshape(rows, LANES)
    t2 = t_flat.reshape(rows, LANES)

    # Sublane granularity per dtype: f32 -> 8, bf16/f16 -> 16, int8/fp8 -> 32.
    gran = max(8, 32 // jnp.dtype(p2.dtype).itemsize)
    tile_rows = min(MAX_TILE_ROWS, _round_up(rows, gran))
    n_tiles = -(-rows // tile_rows)
    num_cores = _num_tensorcores()
    tiles_per_core = -(-n_tiles // num_cores)
    needs_mask = (rows % tile_rows != 0) or (num_cores * tiles_per_core != n_tiles)

    def in_map(c, i):
        # Clamp phantom tiles (past the end) back in range; kernel masks them.
        return (jnp.minimum(c * tiles_per_core + i, n_tiles - 1), 0)

    kernel = functools.partial(
        _mse_kernel, rows=rows, tile_rows=tile_rows,
        tiles_per_core=tiles_per_core, needs_mask=needs_mask)

    partials = pl.pallas_call(
        kernel,
        out_shape=jax.ShapeDtypeStruct((num_cores, 8, LANES), jnp.float32),
        grid_spec=pltpu.PrefetchScalarGridSpec(
            num_scalar_prefetch=0,
            grid=(num_cores, tiles_per_core),
            in_specs=[
                pl.BlockSpec((tile_rows, LANES), in_map),
                pl.BlockSpec((tile_rows, LANES), in_map),
            ],
            out_specs=pl.BlockSpec((1, 8, LANES), lambda c, i: (c, 0, 0)),
        ),
        compiler_params=pltpu.CompilerParams(
            dimension_semantics=("parallel", "arbitrary"),
        ),
    )(p2, t2)

    # Tiny final cross-lane reduction + normalization (num_cores*8*128 elems).
    return jnp.sum(partials) / jnp.float32(n)


class TorchMetricMSE:
    """JAX/Pallas analogue of moai.validation.torchmetric.TorchMetric
    instantiated with (module='regression', type='MeanSquaredError')."""

    # TODO(synk): torchmetrics' stateful update()/reset() accumulation across
    # steps (sum_squared_error / total) is not modeled; forward is stateless.

    def forward(self, preds: jax.Array, target: jax.Array) -> jax.Array:
        return mean_squared_error(preds, target)

    __call__ = forward

    def compute(self, metrics: jax.Array) -> jax.Array:
        # metric aggregation across steps: plain mean (glue, not a hot path)
        return jnp.mean(metrics)


if __name__ == "__main__":
    key = jax.random.PRNGKey(0)
    kp, kt = jax.random.split(key)
    metric = TorchMetricMSE()

    # Small NCHW input consistent with the module; forced through the Pallas
    # kernel to exercise the tail/phantom masking path.
    shape = (2, 4, 16, 16)
    preds = jax.random.normal(kp, shape, dtype=jnp.float32)
    target = jax.random.normal(kt, shape, dtype=jnp.float32)
    out_small = jax.block_until_ready(
        mean_squared_error(preds, target, use_pallas=True))
    ref_small = jnp.mean((preds - target) ** 2)
    assert jnp.allclose(out_small, ref_small, rtol=1e-5, atol=1e-6), (out_small, ref_small)

    # Default metric path on the same input (takes the tiny-input fast path).
    out_default = jax.block_until_ready(metric(preds, target))
    assert jnp.allclose(out_default, ref_small, rtol=1e-5, atol=1e-6), (out_default, ref_small)

    # Larger lane-aligned input: exercises the interior (mask-free) streaming path.
    shape2 = (4, 4, 64, 64)
    p_big = jax.random.normal(kp, shape2, dtype=jnp.float32)
    t_big = jax.random.normal(kt, shape2, dtype=jnp.float32)
    out_big = jax.block_until_ready(metric(p_big, t_big))
    ref_big = jnp.mean((p_big - t_big) ** 2)
    assert jnp.allclose(out_big, ref_big, rtol=1e-5, atol=1e-6), (out_big, ref_big)

    # `compute` aggregation over several metric values.
    agg = jax.block_until_ready(metric.compute(jnp.stack([out_small, out_big])))
    assert jnp.isfinite(agg)

    print("KERNEL_OK")
</pallas_src>

<mosaic_0001>
module attributes {stable_mosaic.version = 11 : i64} {
  func.func @_mse_kernel(%arg0: i32, %arg1: i32, %arg2: memref<16x128xf32, #tpu.memory_space<vmem>>, %arg3: memref<16x128xf32, #tpu.memory_space<vmem>>, %arg4: memref<1x8x128xf32, #tpu.memory_space<vmem>>) attributes {dimension_semantics = [#tpu.dimension_semantics<parallel>, #tpu.dimension_semantics<arbitrary>], iteration_bounds = array<i64: 1, 1>, scalar_prefetch = 0 : i64, scratch_operands = 0 : i64, tpu.core_type = #tpu.core_type<tc>, window_params = [{transform_indices = @transform_0, window_bounds = array<i64: 16, 128>}, {transform_indices = @transform_1, window_bounds = array<i64: 16, 128>}, {transform_indices = @transform_2, window_bounds = array<i64: 1, 8, 128>}]} {
    %c0_i32 = arith.constant 0 : i32
    %0 = arith.cmpi eq, %arg1, %c0_i32 : i32
    %1 = arith.extui %0 : i1 to i32
    %c0_i32_0 = arith.constant 0 : i32
    %2 = arith.cmpi ne, %1, %c0_i32_0 : i32
    scf.if %2 {
      %cst_10 = arith.constant 0.000000e+00 : f32
      %13 = vector.broadcast %cst_10 : f32 to vector<1x8x128xf32>
      %c0_11 = arith.constant 0 : index
      %c0_12 = arith.constant 0 : index
      %c0_13 = arith.constant 0 : index
      %14 = vector.load %arg4[%c0_11, %c0_12, %c0_13] : memref<1x8x128xf32, #tpu.memory_space<vmem>>, vector<1x8x128xf32>
      tpu.vector_store %arg4[%c0_11, %c0_12, %c0_13], %13 {strides = array<i32>} : memref<1x8x128xf32, #tpu.memory_space<vmem>>, vector<1x8x128xf32>,
    } else {
    }
    %c0 = arith.constant 0 : index
    %c0_1 = arith.constant 0 : index
    %3 = vector.load %arg2[%c0, %c0_1] : memref<16x128xf32, #tpu.memory_space<vmem>>, vector<16x128xf32>
    %c0_2 = arith.constant 0 : index
    %c0_3 = arith.constant 0 : index
    %4 = vector.load %arg3[%c0_2, %c0_3] : memref<16x128xf32, #tpu.memory_space<vmem>>, vector<16x128xf32>
    %5 = arith.subf %3, %4 : vector<16x128xf32>
    %6 = arith.mulf %5, %5 : vector<16x128xf32>
    %c0_4 = arith.constant 0 : index
    %c0_5 = arith.constant 0 : index
    %c0_6 = arith.constant 0 : index
    %7 = vector.load %arg4[%c0_4, %c0_5, %c0_6] : memref<1x8x128xf32, #tpu.memory_space<vmem>>, vector<1x8x128xf32>
    %8 = vector.shape_cast %6 : vector<16x128xf32> to vector<2x8x128xf32>
    %cst = arith.constant dense<0.000000e+00> : vector<8x128xf32>
    %9 = vector.multi_reduction <add>, %8, %cst [0] : vector<2x8x128xf32> to vector<8x128xf32>
    %10 = vector.shape_cast %9 : vector<8x128xf32> to vector<1x8x128xf32>
    %11 = arith.addf %7, %10 : vector<1x8x128xf32>
    %c0_7 = arith.constant 0 : index
    %c0_8 = arith.constant 0 : index
    %c0_9 = arith.constant 0 : index
    %12 = vector.load %arg4[%c0_7, %c0_8, %c0_9] : memref<1x8x128xf32, #tpu.memory_space<vmem>>, vector<1x8x128xf32>
    tpu.vector_store %arg4[%c0_7, %c0_8, %c0_9], %11 {strides = array<i32>} : memref<1x8x128xf32, #tpu.memory_space<vmem>>, vector<1x8x128xf32>,
    return
  }
  func.func @transform_0(%arg0: i32, %arg1: i32) -> (i32, i32) {
    %c1_i32 = arith.constant 1 : i32
    %0 = arith.muli %arg0, %c1_i32 : i32
    %1 = arith.addi %0, %arg1 : i32
    %c0_i32 = arith.constant 0 : i32
    %2 = arith.minsi %1, %c0_i32 : i32
    %c0_i32_0 = arith.constant 0 : i32
    %c0_i32_1 = arith.constant 0 : i32
    return %2, %c0_i32_0 : i32, i32
  }
  func.func @transform_1(%arg0: i32, %arg1: i32) -> (i32, i32) {
    %c1_i32 = arith.constant 1 : i32
    %0 = arith.muli %arg0, %c1_i32 : i32
    %1 = arith.addi %0, %arg1 : i32
    %c0_i32 = arith.constant 0 : i32
    %2 = arith.minsi %1, %c0_i32 : i32
    %c0_i32_0 = arith.constant 0 : i32
    %c0_i32_1 = arith.constant 0 : i32
    return %2, %c0_i32_0 : i32, i32
  }
  func.func @transform_2(%arg0: i32, %arg1: i32) -> (i32, i32, i32) {
    %c0_i32 = arith.constant 0 : i32
    %c0_i32_0 = arith.constant 0 : i32
    %c0_i32_1 = arith.constant 0 : i32
    return %arg0, %c0_i32, %c0_i32_0 : i32, i32, i32
  }
}

</mosaic_0001>

<llo_original>
// kernel: tpu_custom_call.1
$region0: #{tpu_custom_call.1}
  #allocation0 [shape = 'u32[]', space=smem, size = 0x4, offset = 0x4, fixed_abs, tag = 'smem constant byte address 0x4 - core index']
  #allocation1 [shape = 'u32[144,128]{1,0:T(1,128)}', space=vmem, size = 0x12000, scoped, tag = 'internal scratch']
  %s0 = inlined_call_operand.hbm [shape: f32[16,128], index: 0, kind: input, shape index: {}]
  %s1 = inlined_call_operand.hbm [shape: f32[16,128], index: 1, kind: input, shape index: {}]
  %s2 = inlined_call_operand.hbm [shape: f32[1,8,128], index: 2, kind: output, shape index: {}]
  %s3 = sld [smem:[#allocation0]]
  $region30: #{tpu_custom_call.1} parent=0
    _
  %s5 = ssub.s32 1, %s3
  %s6 = scalar_select 0, %s5, %s3
  $region1: #{tpu_custom_call.1} parent=0
    #allocation2 [shape = 'u8[8192]{0}', space=vmem, size = 0x2000, scoped, tag = 'input window, operand 0, single buffered']
    #allocation3 [shape = 's32[1]{0}', space=sflag, size = 0x4, scoped, tag = 'scoped memory for tpu_custom_call.1']
    #allocation4 [shape = 's32[1]{0}', space=sflag, size = 0x4, scoped, tag = 'scoped memory for tpu_custom_call.1']
    #allocation5 [shape = 'u8[8192]{0}', space=vmem, size = 0x2000, scoped, tag = 'input window, operand 1, single buffered']
    #allocation6 [shape = 's32[1]{0}', space=sflag, size = 0x4, scoped, tag = 'scoped memory for tpu_custom_call.1']
    #allocation7 [shape = 'u8[4096]{0}', space=vmem, size = 0x1000, scoped, tag = 'output window, operand 0, single buffered']
    %7 = vsyncpa [#allocation3], 0
    %8 = vsyncpa [#allocation6], 0
    %9 = vsyncpa [#allocation4], 0
    // Predicated region
    $region2: #{tpu_custom_call.1} parent=1 // pred_check
      _
    $region3: #{tpu_custom_call.1} parent=1 // pred_check_branch
      %11 = sbr.rel (0) target = $region5
    $region4: #{tpu_custom_call.1} parent=1 // pred_region
      %s12 = sadd.s32 0, 0
      %p13 = scmp.lt.s32.totalorder %s12, 0
      %s14 = scalar_select %p13, %s12, 0
      %s15 = smul.u32 2, %s14
      %s17 = ssub.s32 256, 256
      %18 = vsyncadd [#allocation3], %s17
      %s19 = smul.addr %s15, 128
      %s20 = scalar_lea.hbm %s0, %s19
      %s21 = sshll.u32 [#allocation2], 4
      %s22 = int_to_ptr.vmem [resolvable:$true] %s21
      %27 = dma.hbm_to_vmem [thread:$0]  %s20, 256, %s22, [#allocation3], 128, 128, 8
    $region5: #{tpu_custom_call.1} parent=1 // pred_fallthru
      _
    // Predicated region
    $region6: #{tpu_custom_call.1} parent=1 // pred_check
      _
    $region7: #{tpu_custom_call.1} parent=1 // pred_check_branch
      %29 = sbr.rel (0) target = $region9
    $region8: #{tpu_custom_call.1} parent=1 // pred_region
      %s30 = sadd.s32 0, 0
      %p31 = scmp.lt.s32.totalorder %s30, 0
      %s32 = scalar_select %p31, %s30, 0
      %s33 = smul.u32 2, %s32
      %s35 = ssub.s32 256, 256
      %36 = vsyncadd [#allocation6], %s35
      %s37 = smul.addr %s33, 128
      %s38 = scalar_lea.hbm %s1, %s37
      %s39 = sshll.u32 [#allocation5], 4
      %s40 = int_to_ptr.vmem [resolvable:$true] %s39
      %45 = dma.hbm_to_vmem [thread:$0]  %s38, 256, %s40, [#allocation6], 128, 128, 8
    $region9: #{tpu_custom_call.1} parent=1 // pred_fallthru
      _
    // Predicated region
    $region10: #{tpu_custom_call.1} parent=1 // pred_check
      _
    $region11: #{tpu_custom_call.1} parent=1 // pred_check_branch
      %47 = sbr.rel (0) target = $region13
    $region12: #{tpu_custom_call.1} parent=1 // pred_region
      %48 = dma.done [#allocation3], 256
    $region13: #{tpu_custom_call.1} parent=1 // pred_fallthru
      _
    // Predicated region
    $region14: #{tpu_custom_call.1} parent=1 // pred_check
      _
    $region15: #{tpu_custom_call.1} parent=1 // pred_check_branch
      %50 = sbr.rel (0) target = $region17
    $region16: #{tpu_custom_call.1} parent=1 // pred_region
      %51 = dma.done [#allocation6], 256
    $region17: #{tpu_custom_call.1} parent=1 // pred_fallthru
      _
    %s52 = sadd.s32 0, 0
    %p53 = scmp.lt.s32.totalorder %s52, 0
    %s54 = scalar_select %p53, %s52, 0
    %s55 = smul.u32 2, %s54
    %s56 = sadd.s32 0, 0
    %p57 = scmp.lt.s32.totalorder %s56, 0
    %s58 = scalar_select %p57, %s56, 0
    %s59 = smul.u32 2, %s58
    %p60 = scmp.eq.s32.totalorder 0, 0
    // Predicated region
    $region18: #{tpu_custom_call.1} parent=1 // pred_check
      %p61 = pneg %p60
    $region19: #{tpu_custom_call.1} parent=1 // pred_check_branch
      %63 = sbr.rel (%p61) target = $region21
    $region20: #{tpu_custom_call.1} parent=1 // pred_region
      %64 = vst [vmem:[#allocation7] sm:$0xff] 0.0
    $region21: #{tpu_custom_call.1} parent=1 // pred_fallthru
      _
    %v65 = vld [vmem:[#allocation2] sm:$0xff]
    %v66 = vld [vmem:[#allocation2 + $0x8] sm:$0xff]
    %v67 = vld [vmem:[#allocation5] sm:$0xff]
    %v68 = vld [vmem:[#allocation5 + $0x8] sm:$0xff]
    %v69 = vsub.f32 %v65, %v67
    %v70 = vsub.f32 %v66, %v68
    %v71 = vmul.f32 %v69, %v69
    %v72 = vmul.f32 %v70, %v70
    %v73 = vld [vmem:[#allocation7] sm:$0xff]
    %v74 = vadd.f32 %v71, %v72
    %v75 = vadd.f32 %v73, %v74
    %76 = vst [vmem:[#allocation7] sm:$0xff] %v75
    // Predicated region
    $region22: #{tpu_custom_call.1} parent=1 // pred_check
      _
    $region23: #{tpu_custom_call.1} parent=1 // pred_check_branch
      %78 = sbr.rel (0) target = $region25
    $region24: #{tpu_custom_call.1} parent=1 // pred_region
      %s80 = ssub.s32 128, 128
      %81 = vsyncadd [#allocation4], %s80
      %s83 = sshll.u32 [#allocation7], 4
      %s84 = int_to_ptr.vmem [resolvable:$true] %s83
      %86 = dma.vmem_to_hbm [thread:$0]  %s84, 128, %s2, [#allocation4]
    $region25: #{tpu_custom_call.1} parent=1 // pred_fallthru
      _
    // Predicated region
    $region26: #{tpu_custom_call.1} parent=1 // pred_check
      _
    $region27: #{tpu_custom_call.1} parent=1 // pred_check_branch
      %88 = sbr.rel (0) target = $region29
    $region28: #{tpu_custom_call.1} parent=1 // pred_region
      %89 = dma.done [#allocation4], 128
    $region29: #{tpu_custom_call.1} parent=1 // pred_fallthru
      _
    %90 = vsyncpa [#allocation3], 1
    %91 = vsyncpa [#allocation6], 1
    %92 = vsyncpa [#allocation4], 1

</llo_original>
